<compile_context>
chip_gen: v5e
topology: v5e:2x2
jax: 0.10.0
libtpu: 0.0.40
codegen_flags: <defaults>
</compile_context>

<pallas_src>
import math
from functools import partial

import jax
import jax.numpy as jnp
from jax import lax
from jax.experimental import pallas as pl
from jax.experimental.pallas import tpu as pltpu


def _q_tile(L_Q):
    """Tile L_Q in lane-friendly chunks (multiple of 128 when divisible)."""
    return 128 if (L_Q % 128 == 0) else L_Q


# ----------------------------------------------------------------------------
# Kernel 1: sparsity measure  M[q] = max_sampled(Q.K) - mean_sampled(Q.K)
#   Full K @ Q^T on the MXU; sampled max/mean is recovered with a per-(q,k)
#   sample-count matrix (exact even with duplicate samples).
# ----------------------------------------------------------------------------
def _sparsity_kernel(q_ref, k_ref, ct_ref, m_ref, *, inv_u_part):
    # q_ref : (1, H, TQ, D)     query tile (all heads)
    # k_ref : (1, H, L_K, D)    full keys (all heads)
    # ct_ref: (L_K, TQ)         counts^T (how often key k was sampled for query q)
    # m_ref : (1, H, TQ)        output sparsity measure (f32), L_Q on lanes
    num_heads = q_ref.shape[1]
    cT = ct_ref[...]                                     # resident, loaded once per tile
    sampled = cT > 0                                     # hoisted out of the head loop
    for h in range(num_heads):
        q = q_ref[0, h]                                  # (TQ, D)
        k = k_ref[0, h]                                  # (L_K, D)
        # s[k, q] = K[k] . Q[q]   (MXU, f32 accumulation); (L_K, TQ) layout keeps the
        # reductions' result lane-dense for the (1, TQ) store below.
        s = lax.dot_general(k, q, (((1,), (1,)), ((), ())),
                            preferred_element_type=jnp.float32)      # (L_K, TQ)
        smax = jnp.max(jnp.where(sampled, s, -jnp.inf), axis=0, keepdims=True)
        smean = jnp.sum(cT * s, axis=0, keepdims=True) * inv_u_part
        m_ref[0, pl.ds(h, 1)] = smax - smean             # (1, TQ)


def _sparsity_measure(Q, K, counts_T, U_part):
    B, H, L_Q, D = Q.shape
    L_K = K.shape[2]
    TQ = _q_tile(L_Q)
    nt = L_Q // TQ
    kern = partial(_sparsity_kernel, inv_u_part=1.0 / float(U_part))
    return pl.pallas_call(
        kern,
        out_shape=jax.ShapeDtypeStruct((B, H, L_Q), jnp.float32),
        grid_spec=pltpu.PrefetchScalarGridSpec(
            num_scalar_prefetch=0,
            grid=(B, nt),
            in_specs=[
                pl.BlockSpec((1, H, TQ, D), lambda b, t: (b, 0, t, 0)),
                pl.BlockSpec((1, H, L_K, D), lambda b, t: (b, 0, 0, 0)),
                pl.BlockSpec((L_K, TQ), lambda b, t: (0, t)),
            ],
            out_specs=pl.BlockSpec((1, H, TQ), lambda b, t: (b, 0, t)),
        ),
        compiler_params=pltpu.CompilerParams(
            dimension_semantics=("parallel", "parallel"),
            vmem_limit_bytes=48 * 1024 * 1024),
    )(Q, K, counts_T)


# ----------------------------------------------------------------------------
# Kernel 2: top-u sparse attention + initial context (cumsum / mean) + scatter
# ----------------------------------------------------------------------------
def _context_kernel(*refs, scale, mask_flag):
    if mask_flag:
        qr_ref, k_ref, v_ref, idxc_ref, idxr_ref, tril_ref, ctx_ref = refs
    else:
        qr_ref, k_ref, v_ref, idxc_ref, idxr_ref, ctx_ref = refs
        tril_ref = None
    H = qr_ref.shape[1]
    u_pad = qr_ref.shape[2]
    L_K = k_ref.shape[2]
    TQ = ctx_ref.shape[2]
    D = ctx_ref.shape[3]

    row0 = pl.program_id(1) * TQ                                       # global query offset
    rows = lax.broadcasted_iota(jnp.int32, (TQ, u_pad), 0) + row0      # (TQ, u_pad)
    cols = lax.broadcasted_iota(jnp.int32, (u_pad, L_K), 1)            # (u_pad, L_K)
    tril = tril_ref[...] if mask_flag else None                        # (TQ, L_K), 0/1

    for h in range(H):
        qr = qr_ref[0, h]                      # (u_pad, D)  top-u queries (zero-padded)
        k = k_ref[0, h]                        # (L_K, D)
        v = v_ref[0, h]                        # (L_K, D)
        idx_col = idxc_ref[0, h]               # (u_pad, 1) int32 (padded rows = L_Q sentinel)
        idx_row = idxr_ref[0, h]               # (1, u_pad) int32

        # scores = Q_top @ K^T * scale          (MXU, f32 accumulate)
        scores = lax.dot_general(qr, k, (((1,), (1,)), ((), ())),
                                 preferred_element_type=jnp.float32) * scale
        if mask_flag:
            # ProbMask: key j masked for selected query i when j > index[i]
            # (sentinel L_Q never masks -> padded rows stay finite).
            scores = jnp.where(cols > idx_col, -jnp.inf, scores)

        smax = jnp.max(scores, axis=-1, keepdims=True)
        p = jnp.exp(scores - smax)
        attn = p * pl.reciprocal(jnp.sum(p, axis=-1, keepdims=True), approx=True)
        out_top = jnp.dot(attn.astype(v.dtype), v,
                          preferred_element_type=jnp.float32)          # (u_pad, D)

        # initial context for this L_Q tile
        if mask_flag:
            # cumsum(V) via tril(ones) @ V on the MXU (tril is resident, 0/1 exact)
            ctx0 = jnp.dot(tril, v, preferred_element_type=jnp.float32)     # (TQ, D)
        else:
            vmean = jnp.mean(v.astype(jnp.float32), axis=0, keepdims=True)
            ctx0 = jnp.broadcast_to(vmean, (TQ, D))

        # scatter the top-u outputs into their query rows via one-hot matmul;
        # top-k indices are unique and sentinel-padded columns never match.
        hit = rows == idx_row                                               # (TQ, u_pad)
        onehot = hit.astype(v.dtype)
        # cast out_top to the narrow dtype so this matmul stays on the bf16 MXU path
        scattered = jnp.dot(onehot, out_top.astype(v.dtype),
                            preferred_element_type=jnp.float32)             # (TQ, D)
        sel = jnp.any(hit, axis=-1, keepdims=True)                          # (TQ, 1) bool
        ctx_ref[0, h] = jnp.where(sel, scattered, ctx0).astype(ctx_ref.dtype)


def _sparse_context(Q_red_p, K, V, idx_p, tril, *, L_Q, scale, mask_flag, out_dtype):
    B, H, u_pad, D = Q_red_p.shape
    L_K = K.shape[2]
    TQ = _q_tile(L_Q)
    nt = L_Q // TQ

    idx_col = idx_p[..., None]                 # (B, H, u_pad, 1)
    idx_row = idx_p[:, :, None, :]             # (B, H, 1, u_pad)

    in_specs = [
        pl.BlockSpec((1, H, u_pad, D), lambda b, t: (b, 0, 0, 0)),
        pl.BlockSpec((1, H, L_K, D), lambda b, t: (b, 0, 0, 0)),
        pl.BlockSpec((1, H, L_K, D), lambda b, t: (b, 0, 0, 0)),
        pl.BlockSpec((1, H, u_pad, 1), lambda b, t: (b, 0, 0, 0)),
        pl.BlockSpec((1, H, 1, u_pad), lambda b, t: (b, 0, 0, 0)),
    ]
    args = [Q_red_p, K, V, idx_col, idx_row]
    if mask_flag:
        in_specs.append(pl.BlockSpec((TQ, L_K), lambda b, t: (t, 0)))
        args.append(tril)

    kern = partial(_context_kernel, scale=float(scale), mask_flag=bool(mask_flag))
    return pl.pallas_call(
        kern,
        out_shape=jax.ShapeDtypeStruct((B, H, L_Q, D), out_dtype),
        grid_spec=pltpu.PrefetchScalarGridSpec(
            num_scalar_prefetch=0,
            grid=(B, nt),
            in_specs=in_specs,
            out_specs=pl.BlockSpec((1, H, TQ, D), lambda b, t: (b, 0, t, 0)),
        ),
        compiler_params=pltpu.CompilerParams(
            dimension_semantics=("parallel", "parallel"),
            vmem_limit_bytes=48 * 1024 * 1024),
    )(*args)


# ----------------------------------------------------------------------------
# ProbAttention forward (glue: transposes, sample-count matrix, top-k, gathers)
# ----------------------------------------------------------------------------
def _prob_attention_impl(queries, keys, values, index_sample, *,
                         mask_flag=True, factor=5, scale=None):
    B, L_Q, H, D = queries.shape
    L_K = keys.shape[1]
    cdt = queries.dtype                                   # compute dtype (e.g. bf16)
    Q = jnp.transpose(queries, (0, 2, 1, 3))              # (B, H, L_Q, D)
    K = jnp.transpose(keys, (0, 2, 1, 3))
    V = jnp.transpose(values, (0, 2, 1, 3))

    U_part = min(factor * math.ceil(math.log(L_K)), L_K)
    u = min(factor * math.ceil(math.log(L_Q)), L_Q)
    assert index_sample.shape == (L_Q, U_part)

    # counts[q, k] = how many times key k was sampled for query q (duplicates kept,
    # so max/mean over the sampled set is reproduced exactly).  Tiny, shared across
    # (B, H) -> stays resident in VMEM.  bf16 holds the small integer counts exactly.
    counts = jnp.zeros((L_Q, L_K), jnp.float32).at[
        jnp.arange(L_Q)[:, None], index_sample].add(1.0)
    counts_T = counts.T.astype(cdt)                        # (L_K, L_Q)

    M = _sparsity_measure(Q, K, counts_T, U_part)          # Pallas kernel 1: (B, H, L_Q)
    _, index = lax.top_k(M, u)                             # glue: top-u query indices
    Q_reduce = jnp.take_along_axis(Q, index[..., None], axis=2)     # (B, H, u, D)

    # pad u to a multiple of 8 for MXU-friendly tiles; padded entries get an
    # out-of-range sentinel index (L_Q) so they never mask and never scatter.
    u_pad = max(8, ((u + 7) // 8) * 8)
    pad = u_pad - u
    Q_red_p = jnp.pad(Q_reduce, ((0, 0), (0, 0), (0, pad), (0, 0)))
    idx_p = jnp.pad(index.astype(jnp.int32), ((0, 0), (0, 0), (0, pad)),
                    constant_values=L_Q)

    sc = float(scale) if scale is not None else 1.0 / math.sqrt(D)
    if mask_flag:
        assert L_Q == L_K, "For masked attention, L_Q must equal L_K."
        tril = (jnp.arange(L_Q)[:, None] >= jnp.arange(L_K)[None, :]).astype(cdt)
    else:
        tril = None

    context = _sparse_context(Q_red_p, K, V, idx_p, tril, L_Q=L_Q, scale=sc,
                              mask_flag=mask_flag, out_dtype=cdt)
    return context, index, M


def prob_attention(queries, keys, values, attn_mask=None, *, rng_key=None,
                   mask_flag=True, factor=5, scale=None, output_attention=False):
    """Matches ProbAttention.forward(); returns (context (B,H,L_Q,D), attn)."""
    if rng_key is None:
        rng_key = jax.random.PRNGKey(0)
    L_Q, L_K = queries.shape[1], keys.shape[1]
    U_part = min(factor * math.ceil(math.log(L_K)), L_K)
    index_sample = jax.random.randint(rng_key, (L_Q, U_part), 0, L_K)
    context, _, _ = _prob_attention_impl(queries, keys, values, index_sample,
                                         mask_flag=mask_flag, factor=factor, scale=scale)
    # Dropout in the reference module is constructed but never applied in forward().
    # TODO(synk): output_attention=True path (returning the (B,H,L_Q,L_K) attention map).
    return context, None


# ----------------------------------------------------------------------------
# Pure-JAX reference (same index_sample / selected index) for validation
# ----------------------------------------------------------------------------
def _reference(queries, keys, values, index_sample, index, *, mask_flag=True, scale=None):
    Q = jnp.transpose(queries, (0, 2, 1, 3)).astype(jnp.float32)
    K = jnp.transpose(keys, (0, 2, 1, 3)).astype(jnp.float32)
    V = jnp.transpose(values, (0, 2, 1, 3)).astype(jnp.float32)
    B, H, L_Q, D = Q.shape
    L_K = K.shape[2]
    K_sample = K[:, :, index_sample, :]
    QKs = jnp.einsum('bhqd,bhqsd->bhqs', Q, K_sample)
    M = QKs.max(-1) - QKs.mean(-1)
    Q_reduce = jnp.take_along_axis(Q, index[..., None], axis=2)
    sc = scale if scale is not None else 1.0 / math.sqrt(D)
    scores = jnp.einsum('bhud,bhkd->bhuk', Q_reduce, K) * sc
    if mask_flag:
        mask = jnp.arange(L_K)[None, None, None, :] > index[..., None]
        scores = jnp.where(mask, -jnp.inf, scores)
    attn = jax.nn.softmax(scores, axis=-1)
    out_top = jnp.einsum('bhuk,bhkd->bhud', attn, V)
    if mask_flag:
        ctx = jnp.cumsum(V, axis=2)
    else:
        ctx = jnp.broadcast_to(V.mean(axis=2, keepdims=True), (B, H, L_Q, D))
    bi = jnp.arange(B)[:, None, None]
    hi = jnp.arange(H)[None, :, None]
    ctx = ctx.at[bi, hi, index].set(out_top)
    return ctx, M


if __name__ == "__main__":
    key = jax.random.PRNGKey(0)
    kq, kk, kv, ksamp = jax.random.split(key, 4)

    B, L, H, D = 2, 64, 4, 32
    factor = 5
    dt = jnp.bfloat16                     # bf16 end-to-end (inputs, MXU, context out)
    q = jax.random.normal(kq, (B, L, H, D), jnp.float32).astype(dt)
    k = jax.random.normal(kk, (B, L, H, D), jnp.float32).astype(dt)
    v = jax.random.normal(kv, (B, L, H, D), jnp.float32).astype(dt)

    U_part = min(factor * math.ceil(math.log(L)), L)
    index_sample = jax.random.randint(ksamp, (L, U_part), 0, L)

    for mask_flag in (True, False):
        ctx, index, M = _prob_attention_impl(q, k, v, index_sample,
                                             mask_flag=mask_flag, factor=factor,
                                             scale=None)
        ctx = jax.block_until_ready(ctx)
        assert ctx.shape == (B, H, L, D) and ctx.dtype == dt

        # validate against a pure-JAX f32 reference (shares sampled + top-k indices)
        ctx_ref, M_ref = _reference(q, k, v, index_sample, index,
                                    mask_flag=mask_flag, scale=None)
        assert jnp.allclose(M.astype(jnp.float32), M_ref, rtol=1e-2, atol=1e-2), \
            f"sparsity measure mismatch (mask_flag={mask_flag})"
        assert jnp.allclose(ctx.astype(jnp.float32), ctx_ref, rtol=5e-2, atol=5e-2), \
            f"context mismatch (mask_flag={mask_flag})"

    # public entry point (draws its own key-sampling indices)
    out, attn = prob_attention(q, k, v, None, rng_key=jax.random.PRNGKey(1),
                               mask_flag=True, factor=factor)
    jax.block_until_ready(out)

    print("KERNEL_OK")
</pallas_src>

<mosaic_0001>
module attributes {stable_mosaic.version = 11 : i64} {
  func.func @_sparsity_kernel(%arg0: i32, %arg1: i32, %arg2: memref<1x4x64x32xbf16, #tpu.memory_space<vmem>>, %arg3: memref<1x4x64x32xbf16, #tpu.memory_space<vmem>>, %arg4: memref<64x64xbf16, #tpu.memory_space<vmem>>, %arg5: memref<1x4x64xf32, #tpu.memory_space<vmem>>) attributes {dimension_semantics = [#tpu.dimension_semantics<parallel>, #tpu.dimension_semantics<parallel>], iteration_bounds = array<i64: 2, 1>, scalar_prefetch = 0 : i64, scratch_operands = 0 : i64, tpu.core_type = #tpu.core_type<tc>, window_params = [{transform_indices = @transform_0, window_bounds = array<i64: 1, 4, 64, 32>}, {transform_indices = @transform_1, window_bounds = array<i64: 1, 4, 64, 32>}, {transform_indices = @transform_2, window_bounds = array<i64: 64, 64>}, {transform_indices = @transform_3, window_bounds = array<i64: 1, 4, 64>}]} {
    %c0 = arith.constant 0 : index
    %c0_0 = arith.constant 0 : index
    %0 = vector.load %arg4[%c0, %c0_0] : memref<64x64xbf16, #tpu.memory_space<vmem>>, vector<64x64xbf16>
    %cst = arith.constant 0.000000e+00 : bf16
    %1 = vector.broadcast %cst : bf16 to vector<64x64xbf16>
    %2 = arith.cmpf ogt, %0, %1 : vector<64x64xbf16>
    %c0_1 = arith.constant 0 : index
    %c0_2 = arith.constant 0 : index
    %c0_3 = arith.constant 0 : index
    %c0_4 = arith.constant 0 : index
    %3 = vector.load %arg2[%c0_1, %c0_2, %c0_3, %c0_4] : memref<1x4x64x32xbf16, #tpu.memory_space<vmem>>, vector<1x1x64x32xbf16>
    %4 = vector.shape_cast %3 : vector<1x1x64x32xbf16> to vector<64x32xbf16>
    %c0_5 = arith.constant 0 : index
    %c0_6 = arith.constant 0 : index
    %c0_7 = arith.constant 0 : index
    %c0_8 = arith.constant 0 : index
    %5 = vector.load %arg3[%c0_5, %c0_6, %c0_7, %c0_8] : memref<1x4x64x32xbf16, #tpu.memory_space<vmem>>, vector<1x1x64x32xbf16>
    %6 = vector.shape_cast %5 : vector<1x1x64x32xbf16> to vector<64x32xbf16>
    %cst_9 = arith.constant dense<0.000000e+00> : vector<64x64xf32>
    %7 = tpu.matmul %6, %4, %cst_9 {dimension_numbers = #tpu.dot_dimension_numbers<[1], [1], [0], [0], [0, 0, 1, 0], [], []>} : vector<64x32xbf16>, vector<64x32xbf16>, vector<64x64xf32> -> vector<64x64xf32>
    %cst_10 = arith.constant 0xFF800000 : f32
    %8 = vector.broadcast %cst_10 : f32 to vector<64x64xf32>
    %9 = arith.select %2, %7, %8 : vector<64x64xi1>, vector<64x64xf32>
    %cst_11 = arith.constant dense<0xFF800000> : vector<64xf32>
    %10 = vector.multi_reduction <maximumf>, %9, %cst_11 [0] : vector<64x64xf32> to vector<64xf32>
    %11 = vector.shape_cast %10 : vector<64xf32> to vector<1x64xf32>
    %12 = arith.extf %0 : vector<64x64xbf16> to vector<64x64xf32>
    %13 = arith.mulf %12, %7 : vector<64x64xf32>
    %cst_12 = arith.constant dense<0.000000e+00> : vector<64xf32>
    %14 = vector.multi_reduction <add>, %13, %cst_12 [0] : vector<64x64xf32> to vector<64xf32>
    %15 = vector.shape_cast %14 : vector<64xf32> to vector<1x64xf32>
    %cst_13 = arith.constant 4.000000e-02 : f32
    %16 = vector.broadcast %cst_13 : f32 to vector<1x64xf32>
    %17 = arith.mulf %15, %16 : vector<1x64xf32>
    %18 = arith.subf %11, %17 : vector<1x64xf32>
    %c0_14 = arith.constant 0 : index
    %c0_15 = arith.constant 0 : index
    %c0_16 = arith.constant 0 : index
    %19 = vector.load %arg5[%c0_14, %c0_15, %c0_16] : memref<1x4x64xf32, #tpu.memory_space<vmem>>, vector<1x1x64xf32>
    %20 = vector.shape_cast %19 : vector<1x1x64xf32> to vector<1x64xf32>
    %21 = vector.shape_cast %18 : vector<1x64xf32> to vector<1x1x64xf32>
    tpu.vector_store %arg5[%c0_14, %c0_15, %c0_16], %21 {strides = array<i32>} : memref<1x4x64xf32, #tpu.memory_space<vmem>>, vector<1x1x64xf32>,
    %c0_17 = arith.constant 0 : index
    %c1 = arith.constant 1 : index
    %c0_18 = arith.constant 0 : index
    %c0_19 = arith.constant 0 : index
    %22 = vector.load %arg2[%c0_17, %c1, %c0_18, %c0_19] : memref<1x4x64x32xbf16, #tpu.memory_space<vmem>>, vector<1x1x64x32xbf16>
    %23 = vector.shape_cast %22 : vector<1x1x64x32xbf16> to vector<64x32xbf16>
    %c0_20 = arith.constant 0 : index
    %c1_21 = arith.constant 1 : index
    %c0_22 = arith.constant 0 : index
    %c0_23 = arith.constant 0 : index
    %24 = vector.load %arg3[%c0_20, %c1_21, %c0_22, %c0_23] : memref<1x4x64x32xbf16, #tpu.memory_space<vmem>>, vector<1x1x64x32xbf16>
    %25 = vector.shape_cast %24 : vector<1x1x64x32xbf16> to vector<64x32xbf16>
    %cst_24 = arith.constant dense<0.000000e+00> : vector<64x64xf32>
    %26 = tpu.matmul %25, %23, %cst_24 {dimension_numbers = #tpu.dot_dimension_numbers<[1], [1], [0], [0], [0, 0, 1, 0], [], []>} : vector<64x32xbf16>, vector<64x32xbf16>, vector<64x64xf32> -> vector<64x64xf32>
    %cst_25 = arith.constant 0xFF800000 : f32
    %27 = vector.broadcast %cst_25 : f32 to vector<64x64xf32>
    %28 = arith.select %2, %26, %27 : vector<64x64xi1>, vector<64x64xf32>
    %cst_26 = arith.constant dense<0xFF800000> : vector<64xf32>
    %29 = vector.multi_reduction <maximumf>, %28, %cst_26 [0] : vector<64x64xf32> to vector<64xf32>
    %30 = vector.shape_cast %29 : vector<64xf32> to vector<1x64xf32>
    %31 = arith.extf %0 : vector<64x64xbf16> to vector<64x64xf32>
    %32 = arith.mulf %31, %26 : vector<64x64xf32>
    %cst_27 = arith.constant dense<0.000000e+00> : vector<64xf32>
    %33 = vector.multi_reduction <add>, %32, %cst_27 [0] : vector<64x64xf32> to vector<64xf32>
    %34 = vector.shape_cast %33 : vector<64xf32> to vector<1x64xf32>
    %cst_28 = arith.constant 4.000000e-02 : f32
    %35 = vector.broadcast %cst_28 : f32 to vector<1x64xf32>
    %36 = arith.mulf %34, %35 : vector<1x64xf32>
    %37 = arith.subf %30, %36 : vector<1x64xf32>
    %c0_29 = arith.constant 0 : index
    %c1_30 = arith.constant 1 : index
    %c0_31 = arith.constant 0 : index
    %38 = vector.load %arg5[%c0_29, %c1_30, %c0_31] : memref<1x4x64xf32, #tpu.memory_space<vmem>>, vector<1x1x64xf32>
    %39 = vector.shape_cast %38 : vector<1x1x64xf32> to vector<1x64xf32>
    %40 = vector.shape_cast %37 : vector<1x64xf32> to vector<1x1x64xf32>
    tpu.vector_store %arg5[%c0_29, %c1_30, %c0_31], %40 {strides = array<i32>} : memref<1x4x64xf32, #tpu.memory_space<vmem>>, vector<1x1x64xf32>,
    %c0_32 = arith.constant 0 : index
    %c2 = arith.constant 2 : index
    %c0_33 = arith.constant 0 : index
    %c0_34 = arith.constant 0 : index
    %41 = vector.load %arg2[%c0_32, %c2, %c0_33, %c0_34] : memref<1x4x64x32xbf16, #tpu.memory_space<vmem>>, vector<1x1x64x32xbf16>
    %42 = vector.shape_cast %41 : vector<1x1x64x32xbf16> to vector<64x32xbf16>
    %c0_35 = arith.constant 0 : index
    %c2_36 = arith.constant 2 : index
    %c0_37 = arith.constant 0 : index
    %c0_38 = arith.constant 0 : index
    %43 = vector.load %arg3[%c0_35, %c2_36, %c0_37, %c0_38] : memref<1x4x64x32xbf16, #tpu.memory_space<vmem>>, vector<1x1x64x32xbf16>
    %44 = vector.shape_cast %43 : vector<1x1x64x32xbf16> to vector<64x32xbf16>
    %cst_39 = arith.constant dense<0.000000e+00> : vector<64x64xf32>
    %45 = tpu.matmul %44, %42, %cst_39 {dimension_numbers = #tpu.dot_dimension_numbers<[1], [1], [0], [0], [0, 0, 1, 0], [], []>} : vector<64x32xbf16>, vector<64x32xbf16>, vector<64x64xf32> -> vector<64x64xf32>
    %cst_40 = arith.constant 0xFF800000 : f32
    %46 = vector.broadcast %cst_40 : f32 to vector<64x64xf32>
    %47 = arith.select %2, %45, %46 : vector<64x64xi1>, vector<64x64xf32>
    %cst_41 = arith.constant dense<0xFF800000> : vector<64xf32>
    %48 = vector.multi_reduction <maximumf>, %47, %cst_41 [0] : vector<64x64xf32> to vector<64xf32>
    %49 = vector.shape_cast %48 : vector<64xf32> to vector<1x64xf32>
    %50 = arith.extf %0 : vector<64x64xbf16> to vector<64x64xf32>
    %51 = arith.mulf %50, %45 : vector<64x64xf32>
    %cst_42 = arith.constant dense<0.000000e+00> : vector<64xf32>
    %52 = vector.multi_reduction <add>, %51, %cst_42 [0] : vector<64x64xf32> to vector<64xf32>
    %53 = vector.shape_cast %52 : vector<64xf32> to vector<1x64xf32>
    %cst_43 = arith.constant 4.000000e-02 : f32
    %54 = vector.broadcast %cst_43 : f32 to vector<1x64xf32>
    %55 = arith.mulf %53, %54 : vector<1x64xf32>
    %56 = arith.subf %49, %55 : vector<1x64xf32>
    %c0_44 = arith.constant 0 : index
    %c2_45 = arith.constant 2 : index
    %c0_46 = arith.constant 0 : index
    %57 = vector.load %arg5[%c0_44, %c2_45, %c0_46] : memref<1x4x64xf32, #tpu.memory_space<vmem>>, vector<1x1x64xf32>
    %58 = vector.shape_cast %57 : vector<1x1x64xf32> to vector<1x64xf32>
    %59 = vector.shape_cast %56 : vector<1x64xf32> to vector<1x1x64xf32>
    tpu.vector_store %arg5[%c0_44, %c2_45, %c0_46], %59 {strides = array<i32>} : memref<1x4x64xf32, #tpu.memory_space<vmem>>, vector<1x1x64xf32>,
    %c0_47 = arith.constant 0 : index
    %c3 = arith.constant 3 : index
    %c0_48 = arith.constant 0 : index
    %c0_49 = arith.constant 0 : index
    %60 = vector.load %arg2[%c0_47, %c3, %c0_48, %c0_49] : memref<1x4x64x32xbf16, #tpu.memory_space<vmem>>, vector<1x1x64x32xbf16>
    %61 = vector.shape_cast %60 : vector<1x1x64x32xbf16> to vector<64x32xbf16>
    %c0_50 = arith.constant 0 : index
    %c3_51 = arith.constant 3 : index
    %c0_52 = arith.constant 0 : index
    %c0_53 = arith.constant 0 : index
    %62 = vector.load %arg3[%c0_50, %c3_51, %c0_52, %c0_53] : memref<1x4x64x32xbf16, #tpu.memory_space<vmem>>, vector<1x1x64x32xbf16>
    %63 = vector.shape_cast %62 : vector<1x1x64x32xbf16> to vector<64x32xbf16>
    %cst_54 = arith.constant dense<0.000000e+00> : vector<64x64xf32>
    %64 = tpu.matmul %63, %61, %cst_54 {dimension_numbers = #tpu.dot_dimension_numbers<[1], [1], [0], [0], [0, 0, 1, 0], [], []>} : vector<64x32xbf16>, vector<64x32xbf16>, vector<64x64xf32> -> vector<64x64xf32>
    %cst_55 = arith.constant 0xFF800000 : f32
    %65 = vector.broadcast %cst_55 : f32 to vector<64x64xf32>
    %66 = arith.select %2, %64, %65 : vector<64x64xi1>, vector<64x64xf32>
    %cst_56 = arith.constant dense<0xFF800000> : vector<64xf32>
    %67 = vector.multi_reduction <maximumf>, %66, %cst_56 [0] : vector<64x64xf32> to vector<64xf32>
    %68 = vector.shape_cast %67 : vector<64xf32> to vector<1x64xf32>
    %69 = arith.extf %0 : vector<64x64xbf16> to vector<64x64xf32>
    %70 = arith.mulf %69, %64 : vector<64x64xf32>
    %cst_57 = arith.constant dense<0.000000e+00> : vector<64xf32>
    %71 = vector.multi_reduction <add>, %70, %cst_57 [0] : vector<64x64xf32> to vector<64xf32>
    %72 = vector.shape_cast %71 : vector<64xf32> to vector<1x64xf32>
    %cst_58 = arith.constant 4.000000e-02 : f32
    %73 = vector.broadcast %cst_58 : f32 to vector<1x64xf32>
    %74 = arith.mulf %72, %73 : vector<1x64xf32>
    %75 = arith.subf %68, %74 : vector<1x64xf32>
    %c0_59 = arith.constant 0 : index
    %c3_60 = arith.constant 3 : index
    %c0_61 = arith.constant 0 : index
    %76 = vector.load %arg5[%c0_59, %c3_60, %c0_61] : memref<1x4x64xf32, #tpu.memory_space<vmem>>, vector<1x1x64xf32>
    %77 = vector.shape_cast %76 : vector<1x1x64xf32> to vector<1x64xf32>
    %78 = vector.shape_cast %75 : vector<1x64xf32> to vector<1x1x64xf32>
    tpu.vector_store %arg5[%c0_59, %c3_60, %c0_61], %78 {strides = array<i32>} : memref<1x4x64xf32, #tpu.memory_space<vmem>>, vector<1x1x64xf32>,
    return
  }
  func.func @transform_0(%arg0: i32, %arg1: i32) -> (i32, i32, i32, i32) {
    %c0_i32 = arith.constant 0 : i32
    %c0_i32_0 = arith.constant 0 : i32
    %c0_i32_1 = arith.constant 0 : i32
    return %arg0, %c0_i32, %arg1, %c0_i32_0 : i32, i32, i32, i32
  }
  func.func @transform_1(%arg0: i32, %arg1: i32) -> (i32, i32, i32, i32) {
    %c0_i32 = arith.constant 0 : i32
    %c0_i32_0 = arith.constant 0 : i32
    %c0_i32_1 = arith.constant 0 : i32
    %c0_i32_2 = arith.constant 0 : i32
    return %arg0, %c0_i32, %c0_i32_0, %c0_i32_1 : i32, i32, i32, i32
  }
  func.func @transform_2(%arg0: i32, %arg1: i32) -> (i32, i32) {
    %c0_i32 = arith.constant 0 : i32
    %c0_i32_0 = arith.constant 0 : i32
    return %c0_i32, %arg1 : i32, i32
  }
  func.func @transform_3(%arg0: i32, %arg1: i32) -> (i32, i32, i32) {
    %c0_i32 = arith.constant 0 : i32
    %c0_i32_0 = arith.constant 0 : i32
    return %arg0, %c0_i32, %arg1 : i32, i32, i32
  }
}

</mosaic_0001>

<llo_original>
// kernel: tpu_custom_call.1
$region0: #{tpu_custom_call.1}
  #allocation0 [shape = 'u32[]', space=smem, size = 0x4, offset = 0x4, fixed_abs, tag = 'smem constant byte address 0x4 - core index']
  #allocation1 [shape = 'u32[72,128]{1,0:T(1,128)}', space=vmem, size = 0x9000, scoped, tag = 'internal scratch']
  %s0 = inlined_call_operand.vmem [shape: bf16[2,4,64,32], index: 0, kind: input, shape index: {}]
  %s1 = inlined_call_operand.vmem [shape: bf16[2,4,64,32], index: 1, kind: input, shape index: {}]
  %s2 = inlined_call_operand.vmem [shape: bf16[64,64], index: 2, kind: input, shape index: {}]
  %s3 = inlined_call_operand.hbm [shape: f32[2,4,64], index: 3, kind: output, shape index: {}]
  %s4 = sld [smem:[#allocation0]]
  $region45: #{tpu_custom_call.1} parent=0
    _
  %s6 = ssub.s32 1, %s4
  %s7 = scalar_select 0, %s6, %s4
  $region1: #{tpu_custom_call.1} parent=0
    #allocation2 [shape = 'u8[4096]{0}', space=vmem, size = 0x1000, scoped, tag = 'output window, operand 0']
    #allocation3 [shape = 's32[2]{0}', space=sflag, size = 0x8, scoped, tag = 'scoped memory for tpu_custom_call.1']
    %8 = vsyncpa [#allocation3], 0
    %s9 = scalar_lea.sflag [#allocation3], 1
    %10 = vsyncpa %s9, 0
    loop: start=0, step=1, limit=4
    $region2: #{tpu_custom_call.1} parent=1 // loop_pre_header
      _
    $region3: #{tpu_custom_call.1} parent=1 // loop_header
      %s12 = sphi 0, %s16
      %p13 = scmp.ge.s32.totalorder %s12, 4
      %s19 = sphi 0, %s31
      %s20 = sphi 0, %s27
      %s21 = sphi 0, %s19
      %s22 = sphi 0, %s20
      %s23 = sphi 0, %s21
      %s24 = sphi 0, %s22
      %s36 = sphi 0, %s38
      %s39 = sphi 0, %s36
      %s40 = sphi 0, %s39
      %s56 = sphi 0, %s40
      %s62 = sphi 0, %s64
      %s65 = sphi 0, %s62
      %s66 = sphi 0, %s65
      %s82 = sphi 0, %s66
      %s88 = sphi 0, %s90
      %s91 = sphi 0, %s88
      %s92 = sphi 0, %s91
      %s108 = sphi 0, %s92
      %s116 = sphi 0, %s118
      %s119 = sphi 0, %s116
      %s120 = sphi 0, %s119
      %s136 = sphi 0, %s120
    $region4: #{tpu_custom_call.1} parent=1 // loop_header_branch
      %15 = sbr.rel (%p13) target = $region8
    $region5: #{tpu_custom_call.1} parent=1 // loop_body
      %s17 = ssub.s32 %s12, 1
      %s18 = ssub.s32 %s12, 2
      %s25 = sadd.s32 1, %s20
      %p26 = scmp.ge.s32.totalorder %s25, 1
      %s27 = scalar_select %p26, 0, %s25
      %s28 = sadd.s32 1, %s19
      %s29 = scalar_select %p26, %s28, %s19
      %p30 = scmp.ge.s32.totalorder %s29, 2
      %s31 = scalar_select %p30, 0, %s29
      %s32 = ssub.s32 %s19, %s31
      %s33 = ssub.s32 %s20, %s27
      %s34 = sor.u32 %s32, %s33
      %p35 = scmp.eq.s32.totalorder %s34, 0
      %s37 = sadd.s32 %s36, 1
      %s38 = scalar_select %p35, %s36, %s37
      %p41 = pneg %p35
      %p42 = scmp.eq.s32.totalorder %s12, 1
      %p43 = por %p41, %p42
      %p44 = scmp.ne.s32.totalorder %s36, %s39
      %p45 = scmp.eq.s32.totalorder %s12, 0
      %p46 = por %p44, %p45
      %p47 = scmp.ne.s32.totalorder %s36, %s39
      %p48 = scmp.eq.s32.totalorder %s17, 1
      %p49 = por %p47, %p48
      %p50 = scmp.ne.s32.totalorder %s39, %s40
      %p51 = scmp.eq.s32.totalorder %s17, 0
      %p52 = por %p50, %p51
      %p53 = scmp.ne.s32.totalorder %s39, %s40
      %p54 = scmp.eq.s32.totalorder %s18, 1
      %p55 = por %p53, %p54
      %p57 = scmp.ne.s32.totalorder %s40, %s56
      %p58 = scmp.eq.s32.totalorder %s18, 0
      %p59 = por %p57, %p58
      %s60 = ssub.s32 %s19, %s31
      %p61 = scmp.eq.s32.totalorder %s60, 0
      %s63 = sadd.s32 %s62, 1
      %s64 = scalar_select %p61, %s62, %s63
      %p67 = pneg %p61
      %p68 = scmp.eq.s32.totalorder %s12, 1
      %p69 = por %p67, %p68
      %p70 = scmp.ne.s32.totalorder %s62, %s65
      %p71 = scmp.eq.s32.totalorder %s12, 0
      %p72 = por %p70, %p71
      %p73 = scmp.ne.s32.totalorder %s62, %s65
      %p74 = scmp.eq.s32.totalorder %s17, 1
      %p75 = por %p73, %p74
      %p76 = scmp.ne.s32.totalorder %s65, %s66
      %p77 = scmp.eq.s32.totalorder %s17, 0
      %p78 = por %p76, %p77
      %p79 = scmp.ne.s32.totalorder %s65, %s66
      %p80 = scmp.eq.s32.totalorder %s18, 1
      %p81 = por %p79, %p80
      %p83 = scmp.ne.s32.totalorder %s66, %s82
      %p84 = scmp.eq.s32.totalorder %s18, 0
      %p85 = por %p83, %p84
      %s86 = ssub.s32 %s20, %s27
      %p87 = scmp.eq.s32.totalorder %s86, 0
      %s89 = sadd.s32 %s88, 1
      %s90 = scalar_select %p87, %s88, %s89
      %p93 = pneg %p87
      %p94 = scmp.eq.s32.totalorder %s12, 1
      %p95 = por %p93, %p94
      %p96 = scmp.ne.s32.totalorder %s88, %s91
      %p97 = scmp.eq.s32.totalorder %s12, 0
      %p98 = por %p96, %p97
      %p99 = scmp.ne.s32.totalorder %s88, %s91
      %p100 = scmp.eq.s32.totalorder %s17, 1
      %p101 = por %p99, %p100
      %p102 = scmp.ne.s32.totalorder %s91, %s92
      %p103 = scmp.eq.s32.totalorder %s17, 0
      %p104 = por %p102, %p103
      %p105 = scmp.ne.s32.totalorder %s91, %s92
      %p106 = scmp.eq.s32.totalorder %s18, 1
      %p107 = por %p105, %p106
      %p109 = scmp.ne.s32.totalorder %s92, %s108
      %p110 = scmp.eq.s32.totalorder %s18, 0
      %p111 = por %p109, %p110
      %s112 = ssub.s32 %s19, %s31
      %s113 = ssub.s32 %s20, %s27
      %s114 = sor.u32 %s112, %s113
      %p115 = scmp.eq.s32.totalorder %s114, 0
      %s117 = sadd.s32 %s116, 1
      %s118 = scalar_select %p115, %s116, %s117
      %p121 = pneg %p115
      %p122 = scmp.eq.s32.totalorder %s12, 1
      %p123 = por %p121, %p122
      %p124 = scmp.ne.s32.totalorder %s116, %s119
      %p125 = scmp.eq.s32.totalorder %s12, 0
      %p126 = por %p124, %p125
      %p127 = scmp.ne.s32.totalorder %s116, %s119
      %p128 = scmp.eq.s32.totalorder %s17, 1
      %p129 = por %p127, %p128
      %p130 = scmp.ne.s32.totalorder %s119, %s120
      %p131 = scmp.eq.s32.totalorder %s17, 0
      %p132 = por %p130, %p131
      %p133 = scmp.ne.s32.totalorder %s119, %s120
      %p134 = scmp.eq.s32.totalorder %s18, 1
      %p135 = por %p133, %p134
      %p137 = scmp.ne.s32.totalorder %s120, %s136
      %p138 = scmp.eq.s32.totalorder %s18, 0
      %p139 = por %p137, %p138
      %p140 = scmp.le.s32.totalorder 1, %s12
      %p141 = scmp.lt.s32.totalorder %s12, 3
      %p142 = pnand %p140, %p141
      %p143 = pneg %p142
      // Predicated region
      $region9: #{tpu_custom_call.1} parent=5 // pred_check
        _
      $region10: #{tpu_custom_call.1} parent=5 // pred_check_branch
        %145 = sbr.rel (%p142) target = $region12
      $region11: #{tpu_custom_call.1} parent=5 // pred_region
        %s146 = ssub.s32 %s12, 1
        // Predicated region
        $region13: #{tpu_custom_call.1} parent=11 // pred_check
          %p147 = pneg %p104
        $region14: #{tpu_custom_call.1} parent=11 // pred_check_branch
          %149 = sbr.rel (%p147) target = $region16
        $region15: #{tpu_custom_call.1} parent=11 // pred_region
          %p150 = scmp.lt.s32.totalorder %s22, 0
          %s151 = scalar_select %p150, %s22, 0
          %s152 = smul.addr %s151, 4
          %s153 = scalar_lea.vmem %s2, %s152
        $region16: #{tpu_custom_call.1} parent=11 // pred_fallthru
          _
      $region12: #{tpu_custom_call.1} parent=5 // pred_fallthru
        _
      %p154 = scmp.lt.s32.totalorder %s12, 2
      // Predicated region
      $region17: #{tpu_custom_call.1} parent=5 // pred_check
        %p155 = pneg %p154
      $region18: #{tpu_custom_call.1} parent=5 // pred_check_branch
        %157 = sbr.rel (%p155) target = $region20
      $region19: #{tpu_custom_call.1} parent=5 // pred_region
        // Predicated region
        $region21: #{tpu_custom_call.1} parent=19 // pred_check
          %p158 = pneg %p46
        $region22: #{tpu_custom_call.1} parent=19 // pred_check_branch
          %160 = sbr.rel (%p158) target = $region24
        $region23: #{tpu_custom_call.1} parent=19 // pred_region
          %s161 = smul.u32 8, %s20
          %p162 = scmp.lt.s32.totalorder %s19, 1
          %s163 = scalar_select %p162, %s19, 1
          %p164 = scmp.lt.s32.totalorder %s161, 7
          %s165 = scalar_select %p164, %s161, 7
          %s166 = smul.addr %s163, 32
          %s167 = sadd.s32 %s165, %s166
          %s168 = smul.addr %s167, 4
          %s169 = scalar_lea.vmem %s0, %s168
          %s170 = smul.u32 8, %s20
        $region24: #{tpu_custom_call.1} parent=19 // pred_fallthru
          _
        // Predicated region
        $region25: #{tpu_custom_call.1} parent=19 // pred_check
          %p171 = pneg %p72
        $region26: #{tpu_custom_call.1} parent=19 // pred_check_branch
          %173 = sbr.rel (%p171) target = $region28
        $region27: #{tpu_custom_call.1} parent=19 // pred_region
          %p174 = scmp.lt.s32.totalorder %s19, 1
          %s175 = scalar_select %p174, %s19, 1
          %s176 = smul.addr %s175, 32
          %s177 = smul.addr %s176, 4
          %s178 = scalar_lea.vmem %s1, %s177
        $region28: #{tpu_custom_call.1} parent=19 // pred_fallthru
          _
      $region20: #{tpu_custom_call.1} parent=5 // pred_fallthru
        _
      %p179 = scmp.le.s32.totalorder 1, %s12
      %p180 = scmp.lt.s32.totalorder %s12, 3
      %p181 = pnand %p179, %p180
      %p182 = pneg %p181
      // Predicated region
      $region29: #{tpu_custom_call.1} parent=5 // pred_check
        _
      $region30: #{tpu_custom_call.1} parent=5 // pred_check_branch
        %184 = sbr.rel (%p181) target = $region32
      $region31: #{tpu_custom_call.1} parent=5 // pred_region
        %s185 = ssub.s32 %s12, 1
        %s186 = smul.u32 8, %s22
        %p187 = scmp.lt.s32.totalorder %s21, 1
        %s188 = scalar_select %p187, %s21, 1
        %p189 = scmp.lt.s32.totalorder %s186, 7
        %s190 = scalar_select %p189, %s186, 7
        %s191 = smul.addr %s188, 32
        %s192 = sadd.s32 %s190, %s191
        %s193 = smul.addr %s192, 4
        %s194 = scalar_lea.vmem %s0, %s193
        %p195 = pneg %p52
        %p196 = pneg %p49
        %p197 = scmp.lt.s32.totalorder %s21, 1
        %s198 = scalar_select %p197, %s21, 1
        %s199 = smul.addr %s198, 32
        %s200 = smul.addr %s199, 4
        %s201 = scalar_lea.vmem %s1, %s200
        %p202 = pneg %p78
        %p203 = pneg %p75
        %p204 = scmp.lt.s32.totalorder %s22, 0
        %s205 = scalar_select %p204, %s22, 0
        %s206 = smul.addr %s205, 4
        %s207 = scalar_lea.vmem %s2, %s206
        %p208 = pneg %p104
        %p209 = pneg %p101
        %p210 = pneg %p132
        %p211 = pneg %p129
        %s212 = sand.u32 %s119, 1
        %s213 = scalar_lea.sflag [#allocation3], %s212
        %s214 = sand.u32 %s119, 1
        %s215 = smul.addr %s214, 4
        %s216 = scalar_lea.vmem [#allocation2], %s215
        %s217 = smul.u32 8, %s22
        %p218 = scmp.lt.s32.totalorder %s21, 1
        %s219 = scalar_select %p218, %s21, 1
        %p220 = scmp.lt.s32.totalorder %s217, 7
        %s221 = scalar_select %p220, %s217, 7
        %s222 = smul.addr %s219, 32
        %s223 = sadd.s32 %s221, %s222
        %s224 = smul.addr %s223, 4
        %s225 = scalar_lea.vmem %s0, %s224
        %s226 = smul.u32 8, %s22
        %p227 = scmp.lt.s32.totalorder %s21, 1
        %s228 = scalar_select %p227, %s21, 1
        %s229 = smul.addr %s228, 32
        %s230 = smul.addr %s229, 4
        %s231 = scalar_lea.vmem %s1, %s230
        %p232 = scmp.lt.s32.totalorder %s22, 0
        %s233 = scalar_select %p232, %s22, 0
        %s234 = smul.addr %s233, 4
        %s235 = scalar_lea.vmem %s2, %s234
        %v237 = vld [vmem:[%s235] sm:$0xf]
        %v238 = vld [vmem:[%s235 + $0x4] sm:$0xf]
        %v239 = vld [vmem:[%s235 + $0x8] sm:$0xf]
        %v240 = vld [vmem:[%s235 + $0xc] sm:$0xf]
        %v241 = vld [vmem:[%s235 + $0x10] sm:$0xf]
        %v242 = vld [vmem:[%s235 + $0x14] sm:$0xf]
        %v243 = vld [vmem:[%s235 + $0x18] sm:$0xf]
        %v244 = vld [vmem:[%s235 + $0x1c] sm:$0xf]
        %v245 = vunpack.c.l.bf16 %v237
        %v246 = vunpack.c.l.bf16 %v238
        %v247 = vunpack.c.l.bf16 %v239
        %v248 = vunpack.c.l.bf16 %v240
        %v249 = vunpack.c.l.bf16 %v241
        %v250 = vunpack.c.l.bf16 %v242
        %v251 = vunpack.c.l.bf16 %v243
        %v252 = vunpack.c.l.bf16 %v244
        %vm253 = vcmp.gt.f32.partialorder %v245, 0.0
        %vm254 = vcmp.gt.f32.partialorder %v246, 0.0
        %vm255 = vcmp.gt.f32.partialorder %v247, 0.0
        %vm256 = vcmp.gt.f32.partialorder %v248, 0.0
        %vm257 = vcmp.gt.f32.partialorder %v249, 0.0
        %vm258 = vcmp.gt.f32.partialorder %v250, 0.0
        %vm259 = vcmp.gt.f32.partialorder %v251, 0.0
        %vm260 = vcmp.gt.f32.partialorder %v252, 0.0
        %v261 = vld [vmem:[%s225] sm:$0xf]
        %v262 = vld [vmem:[%s225 + $0x4] sm:$0xf]
        %v263 = vld [vmem:[%s225 + $0x8] sm:$0xf]
        %v264 = vld [vmem:[%s225 + $0xc] sm:$0xf]
        %v265 = vld [vmem:[%s225 + $0x10] sm:$0xf]
        %v266 = vld [vmem:[%s225 + $0x14] sm:$0xf]
        %v267 = vld [vmem:[%s225 + $0x18] sm:$0xf]
        %v268 = vld [vmem:[%s225 + $0x1c] sm:$0xf]
        %v269 = vld [vmem:[%s231] sm:$0xf]
        %v270 = vld [vmem:[%s231 + $0x4] sm:$0xf]
        %v271 = vld [vmem:[%s231 + $0x8] sm:$0xf]
        %v272 = vld [vmem:[%s231 + $0xc] sm:$0xf]
        %v273 = vld [vmem:[%s231 + $0x10] sm:$0xf]
        %v274 = vld [vmem:[%s231 + $0x14] sm:$0xf]
        %v275 = vld [vmem:[%s231 + $0x18] sm:$0xf]
        %v276 = vld [vmem:[%s231 + $0x1c] sm:$0xf]
        %v285 = vunpack.c.l.b16 %v269
        %v286 = vunpack.c.l.b16 %v270
        %v287 = vunpack.c.l.b16 %v271
        %v288 = vunpack.c.l.b16 %v272
        %v289 = vunpack.c.l.b16 %v273
        %v290 = vunpack.c.l.b16 %v274
        %v291 = vunpack.c.l.b16 %v275
        %v292 = vunpack.c.l.b16 %v276
        %v293 = vpack.c.b16 %v286, %v285
        %v294 = vpack.c.b16 %v288, %v287
        %v295 = vpack.c.b16 %v290, %v289
        %v296 = vpack.c.b16 %v292, %v291
        %v305 = vunpack.c.l.b16 %v261
        %v306 = vunpack.c.l.b16 %v262
        %v307 = vunpack.c.l.b16 %v263
        %v308 = vunpack.c.l.b16 %v264
        %v309 = vunpack.c.l.b16 %v265
        %v310 = vunpack.c.l.b16 %v266
        %v311 = vunpack.c.l.b16 %v267
        %v312 = vunpack.c.l.b16 %v268
        %v313 = vpack.c.b16 %v306, %v305
        %v314 = vpack.c.b16 %v308, %v307
        %v315 = vpack.c.b16 %v310, %v309
        %v316 = vpack.c.b16 %v312, %v311
        %vm317 = vcmask 261120
        %v319 = vsel %vm317, %v293, 0
        %v322 = vsel %vm317, %v294, 0
        %v325 = vsel %vm317, %v295, 0
        %v328 = vsel %vm317, %v296, 0
        %v331 = vsel %vm317, %v313, 0
        %v334 = vsel %vm317, %v314, 0
        %v337 = vsel %vm317, %v315, 0
        %v340 = vsel %vm317, %v316, 0
        %342 = vmatpush.bf16.xpose.msra.mxu0 0
        %343 = vmatpush.bf16.xpose.msra.mxu0 0
        %344 = vmatpush.bf16.xpose.msra.mxu0 0
        %345 = vmatpush.bf16.xpose.msra.mxu0 0
        %346 = vmatpush.bf16.xpose.msra.mxu0 %v340
        %347 = vmatpush.bf16.xpose.msra.mxu0 %v337
        %348 = vmatpush.bf16.xpose.msra.mxu0 %v334
        %349 = vmatpush.bf16.xpose.msra.mxu0 %v331
        %350 = vmatmul.bf16.gmra.mxu0 %v319
        %v351 = vpop.f32.mrf.mxu0
        %v352 = vadd.f32 0.0, %v351
        %v353 = vpop.f32.mrf.mxu0
        %v354 = vadd.f32 0.0, %v353
        %355 = vmatmul.bf16.gmra.mxu0 %v322
        %v356 = vpop.f32.mrf.mxu0
        %v357 = vadd.f32 0.0, %v356
        %v358 = vpop.f32.mrf.mxu0
        %v359 = vadd.f32 0.0, %v358
        %360 = vmatmul.bf16.gmra.mxu0 %v325
        %v361 = vpop.f32.mrf.mxu0
        %v362 = vadd.f32 0.0, %v361
        %v363 = vpop.f32.mrf.mxu0
        %v364 = vadd.f32 0.0, %v363
        %365 = vmatmul.bf16.gmra.mxu0 %v328
        %v366 = vpop.f32.mrf.mxu0
        %v367 = vadd.f32 0.0, %v366
        %v368 = vpop.f32.mrf.mxu0
        %v369 = vadd.f32 0.0, %v368
        %370 = vdwg.mxu0
        %v371 = vsel %vm253, %v352, -inf
        %v372 = vsel %vm254, %v354, -inf
        %v373 = vsel %vm255, %v357, -inf
        %v374 = vsel %vm256, %v359, -inf
        %v375 = vsel %vm257, %v362, -inf
        %v376 = vsel %vm258, %v364, -inf
        %v377 = vsel %vm259, %v367, -inf
        %v378 = vsel %vm260, %v369, -inf
        %vm379 = vcmask 523264
        %v380 = vsel %vm379, %v371, -inf
        %v381 = vsel %vm379, %v372, -inf
        %v382 = vsel %vm379, %v373, -inf
        %v383 = vsel %vm379, %v374, -inf
        %v384 = vsel %vm379, %v375, -inf
        %v385 = vmax.f32 %v380, %v384
        %v386 = vsel %vm379, %v376, -inf
        %v387 = vmax.f32 %v381, %v386
        %v388 = vsel %vm379, %v377, -inf
        %v389 = vmax.f32 %v382, %v388
        %v390 = vsel %vm379, %v378, -inf
        %v391 = vmax.f32 %v383, %v390
        %v392 = vmax.f32 %v385, %v387
        %v393 = vmax.f32 %v389, %v391
        %v394 = vmax.f32 %v392, %v393
        %v395 = vrot.slane %v394, 4
        %v396 = vmax.f32 %v394, %v395
        %v397 = vrot.slane %v396, 2
        %v398 = vmax.f32 %v396, %v397
        %v399 = vrot.slane %v398, 1
        %v400 = vmax.f32 %v398, %v399
        %v401 = vmul.f32 %v245, %v352
        %v402 = vmul.f32 %v246, %v354
        %v403 = vmul.f32 %v247, %v357
        %v404 = vmul.f32 %v248, %v359
        %v405 = vmul.f32 %v249, %v362
        %v406 = vmul.f32 %v250, %v364
        %v407 = vmul.f32 %v251, %v367
        %v408 = vmul.f32 %v252, %v369
        %v409 = vsel %vm379, %v401, 0.0
        %v410 = vsel %vm379, %v402, 0.0
        %v411 = vadd.f32 %v409, %v410
        %v412 = vsel %vm379, %v403, 0.0
        %v413 = vadd.f32 %v411, %v412
        %v414 = vsel %vm379, %v404, 0.0
        %v415 = vadd.f32 %v413, %v414
        %v416 = vsel %vm379, %v405, 0.0
        %v417 = vadd.f32 %v415, %v416
        %v418 = vsel %vm379, %v406, 0.0
        %v419 = vadd.f32 %v417, %v418
        %v420 = vsel %vm379, %v407, 0.0
        %v421 = vadd.f32 %v419, %v420
        %v422 = vsel %vm379, %v408, 0.0
        %v423 = vadd.f32 %v421, %v422
        %v424 = vrot.slane %v423, 4
        %v425 = vadd.f32 %v423, %v424
        %v426 = vrot.slane %v425, 2
        %v427 = vadd.f32 %v425, %v426
        %v428 = vrot.slane %v427, 1
        %v429 = vadd.f32 %v427, %v428
        %v430 = vmul.f32 %v429, 0.04
        %v431 = vsub.f32 %v400, %v430
        %vm432 = vcmask 516096
        %433 = vst.msk [vmem:[%s216] sm:$0x1] %vm432, %v431
        %s434 = scalar_lea.vmem %s225, 32
        %v435 = vld [vmem:[%s434] sm:$0xf]
        %v436 = vld [vmem:[%s434 + $0x4] sm:$0xf]
        %v437 = vld [vmem:[%s434 + $0x8] sm:$0xf]
        %v438 = vld [vmem:[%s434 + $0xc] sm:$0xf]
        %v439 = vld [vmem:[%s434 + $0x10] sm:$0xf]
        %v440 = vld [vmem:[%s434 + $0x14] sm:$0xf]
        %v441 = vld [vmem:[%s434 + $0x18] sm:$0xf]
        %v442 = vld [vmem:[%s434 + $0x1c] sm:$0xf]
        %s443 = scalar_lea.vmem %s231, 32
        %v444 = vld [vmem:[%s443] sm:$0xf]
        %v445 = vld [vmem:[%s443 + $0x4] sm:$0xf]
        %v446 = vld [vmem:[%s443 + $0x8] sm:$0xf]
        %v447 = vld [vmem:[%s443 + $0xc] sm:$0xf]
        %v448 = vld [vmem:[%s443 + $0x10] sm:$0xf]
        %v449 = vld [vmem:[%s443 + $0x14] sm:$0xf]
        %v450 = vld [vmem:[%s443 + $0x18] sm:$0xf]
        %v451 = vld [vmem:[%s443 + $0x1c] sm:$0xf]
        %v460 = vunpack.c.l.b16 %v444
        %v461 = vunpack.c.l.b16 %v445
        %v462 = vunpack.c.l.b16 %v446
        %v463 = vunpack.c.l.b16 %v447
        %v464 = vunpack.c.l.b16 %v448
        %v465 = vunpack.c.l.b16 %v449
        %v466 = vunpack.c.l.b16 %v450
        %v467 = vunpack.c.l.b16 %v451
        %v468 = vpack.c.b16 %v461, %v460
        %v469 = vpack.c.b16 %v463, %v462
        %v470 = vpack.c.b16 %v465, %v464
        %v471 = vpack.c.b16 %v467, %v466
        %v480 = vunpack.c.l.b16 %v435
        %v481 = vunpack.c.l.b16 %v436
        %v482 = vunpack.c.l.b16 %v437
        %v483 = vunpack.c.l.b16 %v438
        %v484 = vunpack.c.l.b16 %v439
        %v485 = vunpack.c.l.b16 %v440
        %v486 = vunpack.c.l.b16 %v441
        %v487 = vunpack.c.l.b16 %v442
        %v488 = vpack.c.b16 %v481, %v480
        %v489 = vpack.c.b16 %v483, %v482
        %v490 = vpack.c.b16 %v485, %v484
        %v491 = vpack.c.b16 %v487, %v486
        %v493 = vsel %vm317, %v468, 0
        %v496 = vsel %vm317, %v469, 0
        %v499 = vsel %vm317, %v470, 0
        %v502 = vsel %vm317, %v471, 0
        %v505 = vsel %vm317, %v488, 0
        %v508 = vsel %vm317, %v489, 0
        %v511 = vsel %vm317, %v490, 0
        %v514 = vsel %vm317, %v491, 0
        %516 = vmatpush.bf16.xpose.msra.mxu0 0
        %517 = vmatpush.bf16.xpose.msra.mxu0 0
        %518 = vmatpush.bf16.xpose.msra.mxu0 0
        %519 = vmatpush.bf16.xpose.msra.mxu0 0
        %520 = vmatpush.bf16.xpose.msra.mxu0 %v514
        %521 = vmatpush.bf16.xpose.msra.mxu0 %v511
        %522 = vmatpush.bf16.xpose.msra.mxu0 %v508
        %523 = vmatpush.bf16.xpose.msra.mxu0 %v505
        %524 = vmatmul.bf16.gmra.mxu0 %v493
        %v525 = vpop.f32.mrf.mxu0
        %v526 = vadd.f32 0.0, %v525
        %v527 = vpop.f32.mrf.mxu0
        %v528 = vadd.f32 0.0, %v527
        %529 = vmatmul.bf16.gmra.mxu0 %v496
        %v530 = vpop.f32.mrf.mxu0
        %v531 = vadd.f32 0.0, %v530
        %v532 = vpop.f32.mrf.mxu0
        %v533 = vadd.f32 0.0, %v532
        %534 = vmatmul.bf16.gmra.mxu0 %v499
        %v535 = vpop.f32.mrf.mxu0
        %v536 = vadd.f32 0.0, %v535
        %v537 = vpop.f32.mrf.mxu0
        %v538 = vadd.f32 0.0, %v537
        %539 = vmatmul.bf16.gmra.mxu0 %v502
        %v540 = vpop.f32.mrf.mxu0
        %v541 = vadd.f32 0.0, %v540
        %v542 = vpop.f32.mrf.mxu0
        %v543 = vadd.f32 0.0, %v542
        %544 = vdwg.mxu0
        %v545 = vsel %vm253, %v526, -inf
        %v546 = vsel %vm254, %v528, -inf
        %v547 = vsel %vm255, %v531, -inf
        %v548 = vsel %vm256, %v533, -inf
        %v549 = vsel %vm257, %v536, -inf
        %v550 = vsel %vm258, %v538, -inf
        %v551 = vsel %vm259, %v541, -inf
        %v552 = vsel %vm260, %v543, -inf
        %v553 = vsel %vm379, %v545, -inf
        %v554 = vsel %vm379, %v546, -inf
        %v555 = vsel %vm379, %v547, -inf
        %v556 = vsel %vm379, %v548, -inf
        %v557 = vsel %vm379, %v549, -inf
        %v558 = vmax.f32 %v553, %v557
        %v559 = vsel %vm379, %v550, -inf
        %v560 = vmax.f32 %v554, %v559
        %v561 = vsel %vm379, %v551, -inf
        %v562 = vmax.f32 %v555, %v561
        %v563 = vsel %vm379, %v552, -inf
        %v564 = vmax.f32 %v556, %v563
        %v565 = vmax.f32 %v558, %v560
        %v566 = vmax.f32 %v562, %v564
        %v567 = vmax.f32 %v565, %v566
        %v568 = vrot.slane %v567, 4
        %v569 = vmax.f32 %v567, %v568
        %v570 = vrot.slane %v569, 2
        %v571 = vmax.f32 %v569, %v570
        %v572 = vrot.slane %v571, 1
        %v573 = vmax.f32 %v571, %v572
        %v574 = vmul.f32 %v245, %v526
        %v575 = vmul.f32 %v246, %v528
        %v576 = vmul.f32 %v247, %v531
        %v577 = vmul.f32 %v248, %v533
        %v578 = vmul.f32 %v249, %v536
        %v579 = vmul.f32 %v250, %v538
        %v580 = vmul.f32 %v251, %v541
        %v581 = vmul.f32 %v252, %v543
        %v582 = vsel %vm379, %v574, 0.0
        %v583 = vsel %vm379, %v575, 0.0
        %v584 = vadd.f32 %v582, %v583
        %v585 = vsel %vm379, %v576, 0.0
        %v586 = vadd.f32 %v584, %v585
        %v587 = vsel %vm379, %v577, 0.0
        %v588 = vadd.f32 %v586, %v587
        %v589 = vsel %vm379, %v578, 0.0
        %v590 = vadd.f32 %v588, %v589
        %v591 = vsel %vm379, %v579, 0.0
        %v592 = vadd.f32 %v590, %v591
        %v593 = vsel %vm379, %v580, 0.0
        %v594 = vadd.f32 %v592, %v593
        %v595 = vsel %vm379, %v581, 0.0
        %v596 = vadd.f32 %v594, %v595
        %v597 = vrot.slane %v596, 4
        %v598 = vadd.f32 %v596, %v597
        %v599 = vrot.slane %v598, 2
        %v600 = vadd.f32 %v598, %v599
        %v601 = vrot.slane %v600, 1
        %v602 = vadd.f32 %v600, %v601
        %v603 = vmul.f32 %v602, 0.04
        %v604 = vsub.f32 %v573, %v603
        %605 = vst.msk [vmem:[%s216 + $0x1] sm:$0x1] %vm432, %v604
        %s606 = scalar_lea.vmem %s225, 64
        %v607 = vld [vmem:[%s606] sm:$0xf]
        %v608 = vld [vmem:[%s606 + $0x4] sm:$0xf]
        %v609 = vld [vmem:[%s606 + $0x8] sm:$0xf]
        %v610 = vld [vmem:[%s606 + $0xc] sm:$0xf]
        %v611 = vld [vmem:[%s606 + $0x10] sm:$0xf]
        %v612 = vld [vmem:[%s606 + $0x14] sm:$0xf]
        %v613 = vld [vmem:[%s606 + $0x18] sm:$0xf]
        %v614 = vld [vmem:[%s606 + $0x1c] sm:$0xf]
        %s615 = scalar_lea.vmem %s231, 64
        %v616 = vld [vmem:[%s615] sm:$0xf]
        %v617 = vld [vmem:[%s615 + $0x4] sm:$0xf]
        %v618 = vld [vmem:[%s615 + $0x8] sm:$0xf]
        %v619 = vld [vmem:[%s615 + $0xc] sm:$0xf]
        %v620 = vld [vmem:[%s615 + $0x10] sm:$0xf]
        %v621 = vld [vmem:[%s615 + $0x14] sm:$0xf]
        %v622 = vld [vmem:[%s615 + $0x18] sm:$0xf]
        %v623 = vld [vmem:[%s615 + $0x1c] sm:$0xf]
        %v632 = vunpack.c.l.b16 %v616
        %v633 = vunpack.c.l.b16 %v617
        %v634 = vunpack.c.l.b16 %v618
        %v635 = vunpack.c.l.b16 %v619
        %v636 = vunpack.c.l.b16 %v620
        %v637 = vunpack.c.l.b16 %v621
        %v638 = vunpack.c.l.b16 %v622
        %v639 = vunpack.c.l.b16 %v623
        %v640 = vpack.c.b16 %v633, %v632
        %v641 = vpack.c.b16 %v635, %v634
        %v642 = vpack.c.b16 %v637, %v636
        %v643 = vpack.c.b16 %v639, %v638
        %v652 = vunpack.c.l.b16 %v607
        %v653 = vunpack.c.l.b16 %v608
        %v654 = vunpack.c.l.b16 %v609
        %v655 = vunpack.c.l.b16 %v610
        %v656 = vunpack.c.l.b16 %v611
        %v657 = vunpack.c.l.b16 %v612
        %v658 = vunpack.c.l.b16 %v613
        %v659 = vunpack.c.l.b16 %v614
        %v660 = vpack.c.b16 %v653, %v652
        %v661 = vpack.c.b16 %v655, %v654
        %v662 = vpack.c.b16 %v657, %v656
        %v663 = vpack.c.b16 %v659, %v658
        %v665 = vsel %vm317, %v640, 0
        %v668 = vsel %vm317, %v641, 0
        %v671 = vsel %vm317, %v642, 0
        %v674 = vsel %vm317, %v643, 0
        %v677 = vsel %vm317, %v660, 0
        %v680 = vsel %vm317, %v661, 0
        %v683 = vsel %vm317, %v662, 0
        %v686 = vsel %vm317, %v663, 0
        %688 = vmatpush.bf16.xpose.msra.mxu0 0
        %689 = vmatpush.bf16.xpose.msra.mxu0 0
        %690 = vmatpush.bf16.xpose.msra.mxu0 0
        %691 = vmatpush.bf16.xpose.msra.mxu0 0
        %692 = vmatpush.bf16.xpose.msra.mxu0 %v686
        %693 = vmatpush.bf16.xpose.msra.mxu0 %v683
        %694 = vmatpush.bf16.xpose.msra.mxu0 %v680
        %695 = vmatpush.bf16.xpose.msra.mxu0 %v677
        %696 = vmatmul.bf16.gmra.mxu0 %v665
        %v697 = vpop.f32.mrf.mxu0
        %v698 = vadd.f32 0.0, %v697
        %v699 = vpop.f32.mrf.mxu0
        %v700 = vadd.f32 0.0, %v699
        %701 = vmatmul.bf16.gmra.mxu0 %v668
        %v702 = vpop.f32.mrf.mxu0
        %v703 = vadd.f32 0.0, %v702
        %v704 = vpop.f32.mrf.mxu0
        %v705 = vadd.f32 0.0, %v704
        %706 = vmatmul.bf16.gmra.mxu0 %v671
        %v707 = vpop.f32.mrf.mxu0
        %v708 = vadd.f32 0.0, %v707
        %v709 = vpop.f32.mrf.mxu0
        %v710 = vadd.f32 0.0, %v709
        %711 = vmatmul.bf16.gmra.mxu0 %v674
        %v712 = vpop.f32.mrf.mxu0
        %v713 = vadd.f32 0.0, %v712
        %v714 = vpop.f32.mrf.mxu0
        %v715 = vadd.f32 0.0, %v714
        %716 = vdwg.mxu0
        %v717 = vsel %vm253, %v698, -inf
        %v718 = vsel %vm254, %v700, -inf
        %v719 = vsel %vm255, %v703, -inf
        %v720 = vsel %vm256, %v705, -inf
        %v721 = vsel %vm257, %v708, -inf
        %v722 = vsel %vm258, %v710, -inf
        %v723 = vsel %vm259, %v713, -inf
        %v724 = vsel %vm260, %v715, -inf
        %v725 = vsel %vm379, %v717, -inf
        %v726 = vsel %vm379, %v718, -inf
        %v727 = vsel %vm379, %v719, -inf
        %v728 = vsel %vm379, %v720, -inf
        %v729 = vsel %vm379, %v721, -inf
        %v730 = vmax.f32 %v725, %v729
        %v731 = vsel %vm379, %v722, -inf
        %v732 = vmax.f32 %v726, %v731
        %v733 = vsel %vm379, %v723, -inf
        %v734 = vmax.f32 %v727, %v733
        %v735 = vsel %vm379, %v724, -inf
        %v736 = vmax.f32 %v728, %v735
        %v737 = vmax.f32 %v730, %v732
        %v738 = vmax.f32 %v734, %v736
        %v739 = vmax.f32 %v737, %v738
        %v740 = vrot.slane %v739, 4
        %v741 = vmax.f32 %v739, %v740
        %v742 = vrot.slane %v741, 2
        %v743 = vmax.f32 %v741, %v742
        %v744 = vrot.slane %v743, 1
        %v745 = vmax.f32 %v743, %v744
        %v746 = vmul.f32 %v245, %v698
        %v747 = vmul.f32 %v246, %v700
        %v748 = vmul.f32 %v247, %v703
        %v749 = vmul.f32 %v248, %v705
        %v750 = vmul.f32 %v249, %v708
        %v751 = vmul.f32 %v250, %v710
        %v752 = vmul.f32 %v251, %v713
        %v753 = vmul.f32 %v252, %v715
        %v754 = vsel %vm379, %v746, 0.0
        %v755 = vsel %vm379, %v747, 0.0
        %v756 = vadd.f32 %v754, %v755
        %v757 = vsel %vm379, %v748, 0.0
        %v758 = vadd.f32 %v756, %v757
        %v759 = vsel %vm379, %v749, 0.0
        %v760 = vadd.f32 %v758, %v759
        %v761 = vsel %vm379, %v750, 0.0
        %v762 = vadd.f32 %v760, %v761
        %v763 = vsel %vm379, %v751, 0.0
        %v764 = vadd.f32 %v762, %v763
        %v765 = vsel %vm379, %v752, 0.0
        %v766 = vadd.f32 %v764, %v765
        %v767 = vsel %vm379, %v753, 0.0
        %v768 = vadd.f32 %v766, %v767
        %v769 = vrot.slane %v768, 4
        %v770 = vadd.f32 %v768, %v769
        %v771 = vrot.slane %v770, 2
        %v772 = vadd.f32 %v770, %v771
        %v773 = vrot.slane %v772, 1
        %v774 = vadd.f32 %v772, %v773
        %v775 = vmul.f32 %v774, 0.04
        %v776 = vsub.f32 %v745, %v775
        %777 = vst.msk [vmem:[%s216 + $0x2] sm:$0x1] %vm432, %v776
        %s778 = scalar_lea.vmem %s225, 96
        %v779 = vld [vmem:[%s778] sm:$0xf]
        %v780 = vld [vmem:[%s778 + $0x4] sm:$0xf]
        %v781 = vld [vmem:[%s778 + $0x8] sm:$0xf]
        %v782 = vld [vmem:[%s778 + $0xc] sm:$0xf]
        %v783 = vld [vmem:[%s778 + $0x10] sm:$0xf]
        %v784 = vld [vmem:[%s778 + $0x14] sm:$0xf]
        %v785 = vld [vmem:[%s778 + $0x18] sm:$0xf]
        %v786 = vld [vmem:[%s778 + $0x1c] sm:$0xf]
        %s787 = scalar_lea.vmem %s231, 96
        %v788 = vld [vmem:[%s787] sm:$0xf]
        %v789 = vld [vmem:[%s787 + $0x4] sm:$0xf]
        %v790 = vld [vmem:[%s787 + $0x8] sm:$0xf]
        %v791 = vld [vmem:[%s787 + $0xc] sm:$0xf]
        %v792 = vld [vmem:[%s787 + $0x10] sm:$0xf]
        %v793 = vld [vmem:[%s787 + $0x14] sm:$0xf]
        %v794 = vld [vmem:[%s787 + $0x18] sm:$0xf]
        %v795 = vld [vmem:[%s787 + $0x1c] sm:$0xf]
        %v804 = vunpack.c.l.b16 %v788
        %v805 = vunpack.c.l.b16 %v789
        %v806 = vunpack.c.l.b16 %v790
        %v807 = vunpack.c.l.b16 %v791
        %v808 = vunpack.c.l.b16 %v792
        %v809 = vunpack.c.l.b16 %v793
        %v810 = vunpack.c.l.b16 %v794
        %v811 = vunpack.c.l.b16 %v795
        %v812 = vpack.c.b16 %v805, %v804
        %v813 = vpack.c.b16 %v807, %v806
        %v814 = vpack.c.b16 %v809, %v808
        %v815 = vpack.c.b16 %v811, %v810
        %v824 = vunpack.c.l.b16 %v779
        %v825 = vunpack.c.l.b16 %v780
        %v826 = vunpack.c.l.b16 %v781
        %v827 = vunpack.c.l.b16 %v782
        %v828 = vunpack.c.l.b16 %v783
        %v829 = vunpack.c.l.b16 %v784
        %v830 = vunpack.c.l.b16 %v785
        %v831 = vunpack.c.l.b16 %v786
        %v832 = vpack.c.b16 %v825, %v824
        %v833 = vpack.c.b16 %v827, %v826
        %v834 = vpack.c.b16 %v829, %v828
        %v835 = vpack.c.b16 %v831, %v830
        %v837 = vsel %vm317, %v812, 0
        %v840 = vsel %vm317, %v813, 0
        %v843 = vsel %vm317, %v814, 0
        %v846 = vsel %vm317, %v815, 0
        %v849 = vsel %vm317, %v832, 0
        %v852 = vsel %vm317, %v833, 0
        %v855 = vsel %vm317, %v834, 0
        %v858 = vsel %vm317, %v835, 0
        %860 = vmatpush.bf16.xpose.msra.mxu0 0
        %861 = vmatpush.bf16.xpose.msra.mxu0 0
        %862 = vmatpush.bf16.xpose.msra.mxu0 0
        %863 = vmatpush.bf16.xpose.msra.mxu0 0
        %864 = vmatpush.bf16.xpose.msra.mxu0 %v858
        %865 = vmatpush.bf16.xpose.msra.mxu0 %v855
        %866 = vmatpush.bf16.xpose.msra.mxu0 %v852
        %867 = vmatpush.bf16.xpose.msra.mxu0 %v849
        %868 = vmatmul.bf16.gmra.mxu0 %v837
        %v869 = vpop.f32.mrf.mxu0
        %v870 = vadd.f32 0.0, %v869
        %v871 = vpop.f32.mrf.mxu0
        %v872 = vadd.f32 0.0, %v871
        %873 = vmatmul.bf16.gmra.mxu0 %v840
        %v874 = vpop.f32.mrf.mxu0
        %v875 = vadd.f32 0.0, %v874
        %v876 = vpop.f32.mrf.mxu0
        %v877 = vadd.f32 0.0, %v876
        %878 = vmatmul.bf16.gmra.mxu0 %v843
        %v879 = vpop.f32.mrf.mxu0
        %v880 = vadd.f32 0.0, %v879
        %v881 = vpop.f32.mrf.mxu0
        %v882 = vadd.f32 0.0, %v881
        %883 = vmatmul.bf16.gmra.mxu0 %v846
        %v884 = vpop.f32.mrf.mxu0
        %v885 = vadd.f32 0.0, %v884
        %v886 = vpop.f32.mrf.mxu0
        %v887 = vadd.f32 0.0, %v886
        %888 = vdwg.mxu0
        %v889 = vsel %vm253, %v870, -inf
        %v890 = vsel %vm254, %v872, -inf
        %v891 = vsel %vm255, %v875, -inf
        %v892 = vsel %vm256, %v877, -inf
        %v893 = vsel %vm257, %v880, -inf
        %v894 = vsel %vm258, %v882, -inf
        %v895 = vsel %vm259, %v885, -inf
        %v896 = vsel %vm260, %v887, -inf
        %v897 = vsel %vm379, %v889, -inf
        %v898 = vsel %vm379, %v890, -inf
        %v899 = vsel %vm379, %v891, -inf
        %v900 = vsel %vm379, %v892, -inf
        %v901 = vsel %vm379, %v893, -inf
        %v902 = vmax.f32 %v897, %v901
        %v903 = vsel %vm379, %v894, -inf
        %v904 = vmax.f32 %v898, %v903
        %v905 = vsel %vm379, %v895, -inf
        %v906 = vmax.f32 %v899, %v905
        %v907 = vsel %vm379, %v896, -inf
        %v908 = vmax.f32 %v900, %v907
        %v909 = vmax.f32 %v902, %v904
        %v910 = vmax.f32 %v906, %v908
        %v911 = vmax.f32 %v909, %v910
        %v912 = vrot.slane %v911, 4
        %v913 = vmax.f32 %v911, %v912
        %v914 = vrot.slane %v913, 2
        %v915 = vmax.f32 %v913, %v914
        %v916 = vrot.slane %v915, 1
        %v917 = vmax.f32 %v915, %v916
        %v918 = vmul.f32 %v245, %v870
        %v919 = vmul.f32 %v246, %v872
        %v920 = vmul.f32 %v247, %v875
        %v921 = vmul.f32 %v248, %v877
        %v922 = vmul.f32 %v249, %v880
        %v923 = vmul.f32 %v250, %v882
        %v924 = vmul.f32 %v251, %v885
        %v925 = vmul.f32 %v252, %v887
        %v926 = vsel %vm379, %v918, 0.0
        %v927 = vsel %vm379, %v919, 0.0
        %v928 = vadd.f32 %v926, %v927
        %v929 = vsel %vm379, %v920, 0.0
        %v930 = vadd.f32 %v928, %v929
        %v931 = vsel %vm379, %v921, 0.0
        %v932 = vadd.f32 %v930, %v931
        %v933 = vsel %vm379, %v922, 0.0
        %v934 = vadd.f32 %v932, %v933
        %v935 = vsel %vm379, %v923, 0.0
        %v936 = vadd.f32 %v934, %v935
        %v937 = vsel %vm379, %v924, 0.0
        %v938 = vadd.f32 %v936, %v937
        %v939 = vsel %vm379, %v925, 0.0
        %v940 = vadd.f32 %v938, %v939
        %v941 = vrot.slane %v940, 4
        %v942 = vadd.f32 %v940, %v941
        %v943 = vrot.slane %v942, 2
        %v944 = vadd.f32 %v942, %v943
        %v945 = vrot.slane %v944, 1
        %v946 = vadd.f32 %v944, %v945
        %v947 = vmul.f32 %v946, 0.04
        %v948 = vsub.f32 %v917, %v947
        %949 = vst.msk [vmem:[%s216 + $0x3] sm:$0x1] %vm432, %v948
        %s950 = sand.u32 %s119, 1
        %s951 = scalar_lea.sflag [#allocation3], %s950
        %s952 = sand.u32 %s119, 1
        %s953 = smul.addr %s952, 4
        %s954 = scalar_lea.vmem [#allocation2], %s953
        // Predicated region
        $region33: #{tpu_custom_call.1} parent=31 // pred_check
          %p955 = pneg %p129
        $region34: #{tpu_custom_call.1} parent=31 // pred_check_branch
          %957 = sbr.rel (%p955) target = $region36
        $region35: #{tpu_custom_call.1} parent=31 // pred_region
          %959 = vsyncadd %s951, 0
          %s960 = sadd.s32 %s22, %s21
          %s961 = smul.addr %s960, 4
          %s962 = scalar_lea.hbm %s3, %s961
          %s964 = sshll.u32 %s954, 4
          %s965 = int_to_ptr.vmem [resolvable:$true] %s964
          %s966 = sshll.u32 %s962, 4
          %s967 = int_to_ptr.hbm [resolvable:$true] %s966
          %969 = dma.vmem_to_hbm [thread:$0]  %s965, 64, %s967, %s951
        $region36: #{tpu_custom_call.1} parent=31 // pred_fallthru
          _
      $region32: #{tpu_custom_call.1} parent=5 // pred_fallthru
        _
      %p970 = scmp.le.s32.totalorder 2, %s12
      // Predicated region
      $region37: #{tpu_custom_call.1} parent=5 // pred_check
        %p971 = pneg %p970
      $region38: #{tpu_custom_call.1} parent=5 // pred_check_branch
        %973 = sbr.rel (%p971) target = $region40
      $region39: #{tpu_custom_call.1} parent=5 // pred_region
        %s974 = ssub.s32 %s12, 2
        // Predicated region
        $region41: #{tpu_custom_call.1} parent=39 // pred_check
          %p975 = pneg %p135
        $region42: #{tpu_custom_call.1} parent=39 // pred_check_branch
          %977 = sbr.rel (%p975) target = $region44
        $region43: #{tpu_custom_call.1} parent=39 // pred_region
          %s978 = sand.u32 %s120, 1
          %s979 = scalar_lea.sflag [#allocation3], %s978
          %s980 = sand.u32 %s120, 1
          %s981 = smul.addr %s980, 4
          %s982 = scalar_lea.vmem [#allocation2], %s981
          %984 = dma.done %s979, 64
        $region44: #{tpu_custom_call.1} parent=39 // pred_fallthru
          _
      $region40: #{tpu_custom_call.1} parent=5 // pred_fallthru
        _
    $region6: #{tpu_custom_call.1} parent=1 // loop_footer
      %s16 = sadd.s32 1, %s12
    $region7: #{tpu_custom_call.1} parent=1 // loop_footer_branch
      %11 = sbr.rel target = $region3
    $region8: #{tpu_custom_call.1} parent=1 // loop_exit
      _
    %985 = vsyncpa [#allocation3], 1
    %s986 = scalar_lea.sflag [#allocation3], 1
    %987 = vsyncpa %s986, 1

</llo_original>
